<compile_context>
chip_gen: v6e
topology: v6e:2x2x1
jax: 0.10.0
libtpu: 0.0.40
codegen_flags: <defaults>
</compile_context>

<pallas_src>
import functools

import jax
import jax.numpy as jnp
from jax.experimental import pallas as pl
from jax.experimental.pallas import tpu as pltpu


# ----------------------------------------------------------------------------
# Kernels
# ----------------------------------------------------------------------------
def _mbstd_group_kernel(x_ref, y_ref, *, s, chw, c):
    """One grid step per group: whole (1, s, C, hw) block in VMEM."""
    xv = x_ref[...]                                   # load once; reused below
    xf = xv.astype(jnp.float32)                       # (1, s, C, hw)
    mean = jnp.mean(xf, axis=1, keepdims=True)        # VALU adds over s
    diff = xf - mean
    var = jnp.sum(diff * diff, axis=1) / jnp.float32(s - 1)
    std = jnp.sqrt(var + jnp.float32(1e-8))           # (1, C, hw)
    scalar = jnp.sum(std) * jnp.float32(1.0 / chw)    # mean over C*H*W

    # Pass x through and fill the extra std channel.  Both stores are full-hw
    # lane-dense; the seam only lies on the sublane (channel) axis.
    y_ref[:, :, :c, :] = xv
    hw_dim = y_ref.shape[-1]
    y_ref[:, :, c:, :] = jnp.full((1, s, 1, hw_dim), scalar, dtype=y_ref.dtype)


def _mbstd_chunk_kernel(x_ref, y_ref, acc_ref, *, s, chw, n_x_chunks):
    """Chunked reduction over the channel axis.

    grid = (G, KC + 1); steps k < KC accumulate the sum of per-element stds
    and copy x through; step k == KC broadcasts the finished group scalar into
    the extra (std) channel of the fused output.  The finalize output block is
    a partial edge block (only its first channel row is in bounds); Pallas
    clips the HBM writeback to the in-bounds s*hw row.
    """
    k = pl.program_id(1)

    @pl.when(k == 0)
    def _():
        acc_ref[...] = jnp.zeros_like(acc_ref)

    @pl.when(k < n_x_chunks)
    def _():
        xv = x_ref[...]                               # (1, s, TC, hw) load once
        y_ref[...] = xv                               # passthrough copy
        xf = xv.astype(jnp.float32)
        mean = jnp.mean(xf, axis=1, keepdims=True)    # VALU adds over s
        diff = xf - mean
        var = jnp.sum(diff * diff, axis=1) / jnp.float32(s - 1)
        std = jnp.sqrt(var + jnp.float32(1e-8))       # (1, TC, hw)
        acc_ref[...] = acc_ref[...] + jnp.sum(std)

    @pl.when(k == n_x_chunks)
    def _():
        scalar = acc_ref[...] * jnp.float32(1.0 / chw)            # (1, 1)
        y_ref[...] = jnp.broadcast_to(
            scalar[:, :, None, None], y_ref.shape).astype(y_ref.dtype)


# ----------------------------------------------------------------------------
# Sizing helpers
# ----------------------------------------------------------------------------
def _tpu_vmem_capacity_bytes():
    try:
        return int(pltpu.get_tpu_info().vmem_capacity_bytes)
    except Exception:
        return 64 * 1024 * 1024       # conservative (v7x-sized) default


def _round_up(x, m):
    return ((x + m - 1) // m) * m


def _sublane_multiple(itemsize):
    return 8 * max(1, 4 // itemsize)  # 8 f32, 16 bf16/f16, 32 int8


def _padded_block_bytes(s, tc, hw, itemsize):
    """VMEM bytes of one (1, s, tc, hw) tile incl. sublane/lane padding."""
    sub = _sublane_multiple(itemsize)
    return s * _round_up(tc, sub) * _round_up(hw, 128) * itemsize


# ----------------------------------------------------------------------------
# Wrapper
# ----------------------------------------------------------------------------
def mini_batch_std_dev(x, sub_group_size=4, *, max_block_bytes=None):
    """JAX/Pallas equivalent of miniBatchStdDev.forward(x, subGroupSize)."""
    N, C, H, W = x.shape
    s = min(N, sub_group_size)
    if N % s != 0:
        s = N
    G = N // s

    if s <= 1:
        # Degenerate case from the reference module: std channel is all zeros.
        zeros = jnp.zeros((N, 1, H, W), dtype=x.dtype)
        return jnp.concatenate([x, zeros], axis=1)

    hw = H * W
    chw = C * hw
    itemsize = jnp.dtype(x.dtype).itemsize
    sub_mult = _sublane_multiple(itemsize)

    vmem_cap = _tpu_vmem_capacity_bytes()
    if max_block_bytes is None:
        # ~8 MiB nominal blocks on 128 MiB VMEM parts (v5e/v6e), ~4 MiB on
        # v7x's 64 MiB; this DMA-bound streamer sits near HBM roofline there.
        max_block_bytes = max(2 << 20, min(8 << 20, vmem_cap // 16))

    xg = x.reshape(G, s, C, hw)                       # free view reshape
    out_shape = jax.ShapeDtypeStruct((G, s, C + 1, hw), x.dtype)

    cost = pl.CostEstimate(
        flops=int(6 * N * chw),
        transcendentals=int(G * chw),
        bytes_accessed=int((N * chw + N * (C + 1) * hw) * itemsize),
    )

    in_block_bytes = _padded_block_bytes(s, C, hw, itemsize)
    out_block_bytes = _padded_block_bytes(s, C + 1, hw, itemsize)

    def _vmem_limit(footprint_bytes):
        upper = max(32 << 20, vmem_cap - (4 << 20))
        want = max(32 << 20, footprint_bytes + (16 << 20))
        return int(min(upper, want))

    # --- choose path -------------------------------------------------------
    tc = None
    whole_group = out_block_bytes <= max_block_bytes
    if not whole_group and C % sub_mult == 0:
        # Largest multiple-of-sub_mult divisor of C whose padded block fits.
        for cand in range(sub_mult, C + 1, sub_mult):
            if C % cand != 0:
                continue
            if _padded_block_bytes(s, cand, hw, itemsize) <= max_block_bytes:
                tc = cand
    # tc is None and not whole_group -> oversize whole-group fallback (TODO).

    if tc is None:
        kernel = functools.partial(_mbstd_group_kernel, s=s, chw=chw, c=C)
        f32_work = 3 * (in_block_bytes * 4 // itemsize)
        footprint = 2 * (in_block_bytes + out_block_bytes) + f32_work
        out = pl.pallas_call(
            kernel,
            out_shape=out_shape,
            grid=(G,),
            in_specs=[pl.BlockSpec((1, s, C, hw), lambda g: (g, 0, 0, 0))],
            out_specs=pl.BlockSpec((1, s, C + 1, hw), lambda g: (g, 0, 0, 0)),
            compiler_params=pltpu.CompilerParams(
                dimension_semantics=("parallel",),
                vmem_limit_bytes=_vmem_limit(footprint),
            ),
            cost_estimate=cost,
        )(xg)
    else:
        kc = C // tc                  # number of x chunks; +1 finalize step
        chunk_bytes = _padded_block_bytes(s, tc, hw, itemsize)
        f32_work = 3 * (chunk_bytes * 4 // itemsize)
        footprint = 4 * chunk_bytes + f32_work
        kernel = functools.partial(
            _mbstd_chunk_kernel, s=s, chw=chw, n_x_chunks=kc)
        out = pl.pallas_call(
            kernel,
            out_shape=out_shape,
            grid=(G, kc + 1),
            in_specs=[pl.BlockSpec(
                # Clamp on the finalize step: same block index as the previous
                # step, so the pipeline fetches nothing extra.
                (1, s, tc, hw),
                lambda g, k: (g, 0, jnp.minimum(k, kc - 1), 0))],
            out_specs=pl.BlockSpec((1, s, tc, hw), lambda g, k: (g, 0, k, 0)),
            scratch_shapes=[pltpu.VMEM((1, 1), jnp.float32)],
            compiler_params=pltpu.CompilerParams(
                dimension_semantics=("parallel", "arbitrary"),
                vmem_limit_bytes=_vmem_limit(footprint),
            ),
            cost_estimate=cost,
        )(xg)

    return out.reshape(N, C + 1, H, W)


# ----------------------------------------------------------------------------
# Pure-JAX reference (mirrors the PyTorch module) and self-test
# ----------------------------------------------------------------------------
def _reference(x, sub_group_size=4):
    N, C, H, W = x.shape
    s = min(N, sub_group_size)
    if N % s != 0:
        s = N
    G = N // s
    if s <= 1:
        y = jnp.zeros((N, 1, H, W), dtype=x.dtype)
    else:
        yv = x.reshape(G, s, C, H, W).astype(jnp.float32)
        var = jnp.var(yv, axis=1, ddof=1)
        std = jnp.sqrt(var + 1e-8)
        m = jnp.mean(std.reshape(G, -1), axis=1).reshape(G, 1, 1, 1, 1)
        y = jnp.broadcast_to(m, (G, s, 1, H, W)).reshape(
            N, 1, H, W).astype(x.dtype)
    return jnp.concatenate([x, y], axis=1)


if __name__ == "__main__":
    key = jax.random.PRNGKey(0)
    k1, k2, k3 = jax.random.split(key, 3)

    # 1) Small case -> whole-group path (block dims equal the full array dims).
    x1 = jax.random.normal(k1, (2, 4, 16, 16), dtype=jnp.float32)
    out1 = jax.block_until_ready(mini_batch_std_dev(x1, sub_group_size=4))
    ref1 = _reference(x1, sub_group_size=4)
    assert out1.shape == (2, 5, 16, 16)
    assert jnp.allclose(out1, ref1, atol=1e-5, rtol=1e-5)

    # 2) Forced tiny block budget -> channel-chunked path (grid=(G, KC+1),
    #    accumulator init/finalize, clamped input index, partial edge output).
    x2 = jax.random.normal(k2, (8, 16, 16, 16), dtype=jnp.float32)
    out2 = jax.block_until_ready(
        mini_batch_std_dev(x2, sub_group_size=4, max_block_bytes=32 * 1024))
    ref2 = _reference(x2, sub_group_size=4)
    assert out2.shape == (8, 17, 16, 16)
    assert jnp.allclose(out2, ref2, atol=1e-5, rtol=1e-5)

    # 3) bf16 input, chunked path (sub-32-bit sublane packing, TC=16).
    x3 = jax.random.normal(k3, (8, 32, 8, 8), dtype=jnp.bfloat16)
    out3 = jax.block_until_ready(
        mini_batch_std_dev(x3, sub_group_size=4, max_block_bytes=16 * 1024))
    ref3 = _reference(x3, sub_group_size=4)
    assert out3.shape == (8, 33, 8, 8)
    assert jnp.allclose(out3.astype(jnp.float32), ref3.astype(jnp.float32),
                        atol=1e-2, rtol=1e-2)

    print("KERNEL_OK")
</pallas_src>

<mosaic_0001>
module attributes {stable_mosaic.version = 11 : i64} {
  func.func @_mbstd_group_kernel(%arg0: i32, %arg1: memref<1x2x4x256xf32, #tpu.memory_space<vmem>>, %arg2: memref<1x2x5x256xf32, #tpu.memory_space<vmem>>) attributes {dimension_semantics = [#tpu.dimension_semantics<parallel>], iteration_bounds = array<i64: 1>, scalar_prefetch = 0 : i64, scratch_operands = 0 : i64, tpu.core_type = #tpu.core_type<tc>, window_params = [{transform_indices = @transform_0, window_bounds = array<i64: 1, 2, 4, 256>}, {transform_indices = @transform_1, window_bounds = array<i64: 1, 2, 5, 256>}]} {
    %c0 = arith.constant 0 : index
    %c0_0 = arith.constant 0 : index
    %c0_1 = arith.constant 0 : index
    %c0_2 = arith.constant 0 : index
    %0 = vector.load %arg1[%c0, %c0_0, %c0_1, %c0_2] : memref<1x2x4x256xf32, #tpu.memory_space<vmem>>, vector<1x2x4x256xf32>
    %cst = arith.constant dense<0.000000e+00> : vector<1x4x256xf32>
    %1 = vector.multi_reduction <add>, %0, %cst [1] : vector<1x2x4x256xf32> to vector<1x4x256xf32>
    %2 = vector.shape_cast %1 : vector<1x4x256xf32> to vector<1x1x4x256xf32>
    %cst_3 = arith.constant 2.000000e+00 : f32
    %3 = vector.broadcast %cst_3 : f32 to vector<1x1x4x256xf32>
    %4 = arith.divf %2, %3 : vector<1x1x4x256xf32>
    %5 = vector.broadcast %4 : vector<1x1x4x256xf32> to vector<1x2x4x256xf32>
    %6 = arith.subf %0, %5 : vector<1x2x4x256xf32>
    %7 = arith.mulf %6, %6 : vector<1x2x4x256xf32>
    %cst_4 = arith.constant dense<0.000000e+00> : vector<1x4x256xf32>
    %8 = vector.multi_reduction <add>, %7, %cst_4 [1] : vector<1x2x4x256xf32> to vector<1x4x256xf32>
    %cst_5 = arith.constant 1.000000e+00 : f32
    %9 = vector.broadcast %cst_5 : f32 to vector<1x4x256xf32>
    %10 = arith.divf %8, %9 : vector<1x4x256xf32>
    %cst_6 = arith.constant 9.99999993E-9 : f32
    %11 = vector.broadcast %cst_6 : f32 to vector<1x4x256xf32>
    %12 = arith.addf %10, %11 : vector<1x4x256xf32>
    %13 = math.sqrt %12 : vector<1x4x256xf32>
    %14 = vector.shape_cast %13 : vector<1x4x256xf32> to vector<1x1x4x256xf32>
    %cst_7 = arith.constant dense<0.000000e+00> : vector<1xf32>
    %15 = vector.multi_reduction <add>, %14, %cst_7 [1, 2, 3] : vector<1x1x4x256xf32> to vector<1xf32>
    %16 = vector.shape_cast %15 : vector<1xf32> to vector<1x1x1x1xf32>
    %17 = vector.extract %16[0, 0, 0, 0] : f32 from vector<1x1x1x1xf32>
    %cst_8 = arith.constant 9.765625E-4 : f32
    %18 = arith.mulf %17, %cst_8 : f32
    %c0_9 = arith.constant 0 : index
    %c0_10 = arith.constant 0 : index
    %c0_11 = arith.constant 0 : index
    %c0_12 = arith.constant 0 : index
    %19 = vector.load %arg2[%c0_9, %c0_10, %c0_11, %c0_12] : memref<1x2x5x256xf32, #tpu.memory_space<vmem>>, vector<1x2x4x256xf32>
    tpu.vector_store %arg2[%c0_9, %c0_10, %c0_11, %c0_12], %0 {strides = array<i32>} : memref<1x2x5x256xf32, #tpu.memory_space<vmem>>, vector<1x2x4x256xf32>,
    %20 = vector.broadcast %18 : f32 to vector<1x2x1x256xf32>
    %c0_13 = arith.constant 0 : index
    %c0_14 = arith.constant 0 : index
    %c4 = arith.constant 4 : index
    %c0_15 = arith.constant 0 : index
    %21 = vector.load %arg2[%c0_13, %c0_14, %c4, %c0_15] : memref<1x2x5x256xf32, #tpu.memory_space<vmem>>, vector<1x2x1x256xf32>
    tpu.vector_store %arg2[%c0_13, %c0_14, %c4, %c0_15], %20 {strides = array<i32>} : memref<1x2x5x256xf32, #tpu.memory_space<vmem>>, vector<1x2x1x256xf32>,
    return
  }
  func.func @transform_0(%arg0: i32) -> (i32, i32, i32, i32) {
    %c0_i32 = arith.constant 0 : i32
    %c0_i32_0 = arith.constant 0 : i32
    %c0_i32_1 = arith.constant 0 : i32
    %c0_i32_2 = arith.constant 0 : i32
    return %arg0, %c0_i32, %c0_i32_0, %c0_i32_1 : i32, i32, i32, i32
  }
  func.func @transform_1(%arg0: i32) -> (i32, i32, i32, i32) {
    %c0_i32 = arith.constant 0 : i32
    %c0_i32_0 = arith.constant 0 : i32
    %c0_i32_1 = arith.constant 0 : i32
    %c0_i32_2 = arith.constant 0 : i32
    return %arg0, %c0_i32, %c0_i32_0, %c0_i32_1 : i32, i32, i32, i32
  }
}

</mosaic_0001>

<llo_original>
// kernel: tpu_custom_call.1
$region0: #{tpu_custom_call.1}
  #allocation0 [shape = 'u32[]', space=smem, size = 0x4, offset = 0x4, fixed_abs, tag = 'smem constant byte address 0x4 - core index']
  #allocation1 [shape = 'u32[144,128]{1,0:T(1,128)}', space=vmem, size = 0x12000, scoped, tag = 'internal scratch']
  %s0 = inlined_call_operand.hbm [shape: f32[1,2,4,256], index: 0, kind: input, shape index: {}]
  %s1 = inlined_call_operand.vmem [shape: f32[1,2,5,256], index: 1, kind: output, shape index: {}]
  %s2 = sld [smem:[#allocation0]]
  $region18: #{tpu_custom_call.1} parent=0
    _
  %s4 = ssub.s32 1, %s2
  %s5 = scalar_select 0, %s4, %s2
  $region1: #{tpu_custom_call.1} parent=0
    #allocation2 [shape = 'u8[8192]{0}', space=vmem, size = 0x2000, scoped, tag = 'input window, operand 0, single buffered']
    #allocation3 [shape = 's32[1]{0}', space=sflag, size = 0x4, scoped, tag = 'scoped memory for tpu_custom_call.1']
    %6 = vsyncpa [#allocation3], 0
    // Predicated region
    $region2: #{tpu_custom_call.1} parent=1 // pred_check
      _
    $region3: #{tpu_custom_call.1} parent=1 // pred_check_branch
      %8 = sbr.rel (0) target = $region5
    $region4: #{tpu_custom_call.1} parent=1 // pred_region
      %s10 = ssub.s32 256, 256
      %11 = vsyncadd [#allocation3], %s10
      %s12 = sshll.u32 [#allocation2], 4
      %s13 = int_to_ptr.vmem [resolvable:$true] %s12
      %18 = dma.hbm_to_vmem [thread:$0]  %s0, 256, %s13, [#allocation3], 128, 128, 8
    $region5: #{tpu_custom_call.1} parent=1 // pred_fallthru
      _
    // Predicated region
    $region6: #{tpu_custom_call.1} parent=1 // pred_check
      _
    $region7: #{tpu_custom_call.1} parent=1 // pred_check_branch
      %20 = sbr.rel (0) target = $region9
    $region8: #{tpu_custom_call.1} parent=1 // pred_region
      %21 = dma.done [#allocation3], 256
    $region9: #{tpu_custom_call.1} parent=1 // pred_fallthru
      _
    %v22 = vld [vmem:[#allocation2] sm:$0xff]
    %v23 = vld [vmem:[#allocation2 + $0x8] sm:$0xff]
    %v26 = vcombine.high %v22, %v22
    %v27 = vcombine.high %v23, %v23
    %vm30 = vcmask 1043456
    %v31 = vsel %vm30, %v22, 0.0
    %v32 = vsel %vm30, %v23, 0.0
    %v33 = vadd.f32 %v31, %v32
    %v34 = vsel %vm30, %v26, 0.0
    %v35 = vsel %vm30, %v27, 0.0
    %v36 = vadd.f32 %v34, %v35
    %v37 = vrcp.pop 2.0
    %v38 = vmul.f32 %v33, %v37
    %v39 = vmul.f32 %v36, %v37
    %v42 = vcombine.low %v38, %v39
    %v44 = vsub.f32 %v22, %v42
    %v45 = vsub.f32 %v23, %v42
    %v46 = vmul.f32 %v44, %v44
    %v47 = vmul.f32 %v45, %v45
    %v50 = vcombine.high %v46, %v46
    %v51 = vcombine.high %v47, %v47
    %v54 = vsel %vm30, %v46, 0.0
    %v55 = vsel %vm30, %v47, 0.0
    %v56 = vadd.f32 %v54, %v55
    %v57 = vsel %vm30, %v50, 0.0
    %v58 = vsel %vm30, %v51, 0.0
    %v59 = vadd.f32 %v57, %v58
    %v60 = vadd.f32 %v56, 1e-08
    %v61 = vadd.f32 %v59, 1e-08
    %v62 = vrsqrt.pop %v60
    %v63 = vmul.f32 %v60, %v62
    %vm64 = vcmp.eq.f32.partialorder %v60, inf
    %v65 = vsel %vm64, %v60, %v63
    %vm66 = vcmp.eq.f32.partialorder %v60, 0.0
    %v67 = vand.u32 %v60, 2147483648
    %v68 = vsel %vm66, %v67, %v65
    %v69 = vrsqrt.pop %v61
    %v70 = vmul.f32 %v61, %v69
    %vm71 = vcmp.eq.f32.partialorder %v61, inf
    %v72 = vsel %vm71, %v61, %v70
    %vm73 = vcmp.eq.f32.partialorder %v61, 0.0
    %v74 = vand.u32 %v61, 2147483648
    %v75 = vsel %vm73, %v74, %v72
    %v76 = vsel %vm30, %v68, 0.0
    %v77 = vsel %vm30, %v75, 0.0
    %v78 = vadd.f32 %v76, %v77
    %79 = vadd.xlane.f32.xlu0 %v78
    %v80 = vpop.xlane.xlu0 %79
    %v81 = vrot.slane %v80, 4
    %v82 = vadd.f32 %v80, %v81
    %v83 = vrot.slane %v82, 2
    %v84 = vadd.f32 %v82, %v83
    %v85 = vrot.slane %v84, 1
    %v86 = vadd.f32 %v84, %v85
    %s87 = vtos %v86
    %s88 = smul.f32 %s87, 0.0009765625
    %89 = vst [vmem:[%s1] sm:$0xf] %v22
    %90 = vst [vmem:[%s1 + $0x8] sm:$0xf] %v26
    %91 = vst [vmem:[%s1 + $0x10] sm:$0xf] %v23
    %92 = vst [vmem:[%s1 + $0x18] sm:$0xf] %v27
    %v93 = vstv %s88
    %v94 = vlaneseq
    %vm95 = vcmp.ge.s32.totalorder %v94, 0
    %vm96 = vcmp.lt.s32.totalorder %v94, 256
    %vm97 = vmand %vm95, %vm96
    %s98 = scalar_lea.vmem %s1, 4
    %99 = vst.msk [vmem:[%s98] ss:$8 sm:$0x3] %vm97, %v93
    %100 = vst.msk [vmem:[%s98] ss:$8 sm:$0x0] %vm97, %v93
    %s101 = scalar_lea.vmem %s1, 20
    %102 = vst.msk [vmem:[%s101] ss:$8 sm:$0x3] %vm97, %v93
    %103 = vst.msk [vmem:[%s101] ss:$8 sm:$0x0] %vm97, %v93
    // Predicated region
    $region10: #{tpu_custom_call.1} parent=1 // pred_check
      _
    $region11: #{tpu_custom_call.1} parent=1 // pred_check_branch
      %105 = sbr.rel (0) target = $region13
    $region12: #{tpu_custom_call.1} parent=1 // pred_region
      _
    $region13: #{tpu_custom_call.1} parent=1 // pred_fallthru
      _
    // Predicated region
    $region14: #{tpu_custom_call.1} parent=1 // pred_check
      _
    $region15: #{tpu_custom_call.1} parent=1 // pred_check_branch
      %107 = sbr.rel (0) target = $region17
    $region16: #{tpu_custom_call.1} parent=1 // pred_region
      _
    $region17: #{tpu_custom_call.1} parent=1 // pred_fallthru
      _
    %108 = vsyncpa [#allocation3], 1

</llo_original>
